<compile_context>
chip_gen: v5e
topology: v5e:2x2
jax: 0.10.0
libtpu: 0.0.40
codegen_flags: <defaults>
</compile_context>

<pallas_src>
import jax
import jax.numpy as jnp
from jax.experimental import pallas as pl
from jax.experimental.pallas import tpu as pltpu

TEMPERATURE = 0.5  # module default


# ----------------------------------------------------------------------------- kernel

def _fused_tta_kernel(x_ref, w_ref, b_ref, o_ref):
    """Fused TTA forward for one (batch, spatial-tile) block.

    Because the head + sigmoid + **0.5 are pointwise, the 3-transform TTA mean equals
    a single un-augmented pass, so the body is just: 1x1-conv head -> sigmoid fused
    with ** 0.5 (rsqrt(1 + exp(-logit))) -> store.

    x_ref: (1, C, T_HW)  VMEM  lane-dense input block (T_HW multiple of 128)
    w_ref: (K, C)        SMEM  1x1-conv head weight (scalar reads)
    b_ref: (K,)          SMEM  1x1-conv head bias
    o_ref: (1, K, T_HW)  VMEM  merged (mean over T) mask block
    """
    C = x_ref.shape[1]
    K = o_ref.shape[1]

    x = x_ref[0]                                   # (C, T_HW): one lane-dense load
    rows = []
    for k in range(K):                             # K*C = 12 broadcast VPU FMAs / pixel
        logit = x[0:1, :] * w_ref[k, 0]
        for c in range(1, C):
            logit = logit + x[c:c + 1, :] * w_ref[k, c]
        logit = logit + b_ref[k]
        # after_model_function (sigmoid) fused with ** temperature.
        if TEMPERATURE == 0.5:
            mask = jax.lax.rsqrt(1.0 + jnp.exp(-logit))     # sigmoid(x) ** 0.5, 2 EUP ops
        else:
            p = jnp.maximum(jax.nn.sigmoid(logit), jnp.finfo(jnp.float32).tiny)
            mask = jnp.power(p, TEMPERATURE)                # clamped: no log(0)
        rows.append(mask)                          # (1, T_HW)

    # Merger(type='mean') over T identical terms == the single pass; one merged,
    # lane-dense store per block.
    o_ref[0] = jnp.concatenate(rows, axis=0)       # (K, T_HW)


# ----------------------------------------------------------------------------- wrapper

def _pick_tile_hw(hw, max_tile=4096):
    """Largest lane-dense (multiple-of-128) tile dividing H*W, capped at max_tile."""
    if hw % 128 != 0:
        return hw                      # odd spatial size: take the full extent
    t = min((max_tile // 128) * 128, hw)
    while hw % t != 0:
        t -= 128
    return t


def segmentation_tta_forward(image_nchw, w_kc, b_k):
    """Full SegmentationTTAWrapper.forward (merge_mode='mean', output_mask_key=None)."""
    N, C, H, W = image_nchw.shape
    K = w_kc.shape[0]
    HW = H * W
    tile_hw = _pick_tile_hw(HW)

    x = image_nchw.reshape(N, C, HW)               # lane-dense last dim

    out = pl.pallas_call(
        _fused_tta_kernel,
        out_shape=jax.ShapeDtypeStruct((N, K, HW), jnp.float32),
        grid_spec=pltpu.PrefetchScalarGridSpec(
            num_scalar_prefetch=0,
            grid=(N, HW // tile_hw),
            in_specs=[
                pl.BlockSpec((1, C, tile_hw), lambda n, h: (n, 0, h)),
                pl.BlockSpec(memory_space=pltpu.MemorySpace.SMEM),   # weight (K, C)
                pl.BlockSpec(memory_space=pltpu.MemorySpace.SMEM),   # bias (K,)
            ],
            out_specs=pl.BlockSpec((1, K, tile_hw), lambda n, h: (n, 0, h)),
        ),
        compiler_params=pltpu.CompilerParams(
            # batch axis + spatial-tile axis both parallel: feeds both v7x TCs even
            # when N == 1; costs only ~0.35 us/extra step on single-TC v5e/v6e.
            dimension_semantics=("parallel", "parallel"),
        ),
    )(x, w_kc, b_k)
    return out.reshape(N, K, H, W)


# --------------------------------------------------------------------------- reference

_REF_TRANSFORMS = (
    (lambda a: a,                lambda a: a),                 # identity
    (lambda a: a[..., ::-1],     lambda a: a[..., ::-1]),      # hflip (W axis)
    (lambda a: a[..., ::-1, :],  lambda a: a[..., ::-1, :]),   # vflip (H axis)
)


def _reference_forward(image_nchw, w_kc, b_k):
    """Pure-JAX reference of the FULL 3-transform TTA (mirrors the PyTorch semantics)."""
    outs = []
    for t_aug, t_deaug in _REF_TRANSFORMS:
        a = t_aug(image_nchw)                                            # (N,C,H,W)
        logits = jnp.einsum("nchw,kc->nkhw", a, w_kc) + b_k.reshape(1, -1, 1, 1)
        probs = jax.nn.sigmoid(logits)
        outs.append(t_deaug(probs ** TEMPERATURE))
    return jnp.mean(jnp.stack(outs, axis=0), axis=0)                     # (N,K,H,W)


# --------------------------------------------------------------------------------- main

if __name__ == "__main__":
    N, C, H, W = 2, 4, 16, 16     # input image: NCHW
    K = 3                         # number of segmentation classes

    key = jax.random.PRNGKey(0)
    k_img, k_w, k_b = jax.random.split(key, 3)
    image = jax.random.normal(k_img, (N, C, H, W), dtype=jnp.float32)
    weight = 0.5 * jax.random.normal(k_w, (K, C), dtype=jnp.float32)   # 1x1 conv weight
    bias = 0.1 * jax.random.normal(k_b, (K,), dtype=jnp.float32)       # 1x1 conv bias

    out = jax.block_until_ready(segmentation_tta_forward(image, weight, bias))

    ref = _reference_forward(image, weight, bias)
    assert out.shape == (N, K, H, W), out.shape
    assert jnp.allclose(out, ref, rtol=1e-4, atol=1e-5), "mismatch vs pure-JAX reference"

    print("KERNEL_OK")
</pallas_src>

<mosaic_0001>
module attributes {stable_mosaic.version = 11 : i64} {
  func.func @_fused_tta_kernel(%arg0: i32, %arg1: i32, %arg2: memref<1x4x256xf32, #tpu.memory_space<vmem>>, %arg3: memref<3x4xf32, #tpu.memory_space<smem>>, %arg4: memref<3xf32, #tpu.memory_space<smem>>, %arg5: memref<1x3x256xf32, #tpu.memory_space<vmem>>) attributes {dimension_semantics = [#tpu.dimension_semantics<parallel>, #tpu.dimension_semantics<parallel>], iteration_bounds = array<i64: 2, 1>, scalar_prefetch = 0 : i64, scratch_operands = 0 : i64, tpu.core_type = #tpu.core_type<tc>, window_params = [{transform_indices = @transform_0, window_bounds = array<i64: 1, 4, 256>}, {transform_indices = @transform_1, window_bounds = array<i64: 3, 4>}, {transform_indices = @transform_2, window_bounds = array<i64: 3>}, {transform_indices = @transform_3, window_bounds = array<i64: 1, 3, 256>}]} {
    %c0 = arith.constant 0 : index
    %c0_0 = arith.constant 0 : index
    %c0_1 = arith.constant 0 : index
    %0 = vector.load %arg2[%c0, %c0_0, %c0_1] : memref<1x4x256xf32, #tpu.memory_space<vmem>>, vector<1x4x256xf32>
    %1 = vector.shape_cast %0 : vector<1x4x256xf32> to vector<4x256xf32>
    %2 = vector.extract_strided_slice %1 {offsets = [0, 0], sizes = [1, 256], strides = [1, 1]} : vector<4x256xf32> to vector<1x256xf32>
    %c0_2 = arith.constant 0 : index
    %c0_3 = arith.constant 0 : index
    %3 = memref.load %arg3[%c0_2, %c0_3] : memref<3x4xf32, #tpu.memory_space<smem>>
    %4 = vector.broadcast %3 : f32 to vector<1x256xf32>
    %5 = arith.mulf %2, %4 : vector<1x256xf32>
    %6 = vector.extract_strided_slice %1 {offsets = [1, 0], sizes = [1, 256], strides = [1, 1]} : vector<4x256xf32> to vector<1x256xf32>
    %c0_4 = arith.constant 0 : index
    %c1 = arith.constant 1 : index
    %7 = memref.load %arg3[%c0_4, %c1] : memref<3x4xf32, #tpu.memory_space<smem>>
    %8 = vector.broadcast %7 : f32 to vector<1x256xf32>
    %9 = arith.mulf %6, %8 : vector<1x256xf32>
    %10 = arith.addf %5, %9 : vector<1x256xf32>
    %11 = vector.extract_strided_slice %1 {offsets = [2, 0], sizes = [1, 256], strides = [1, 1]} : vector<4x256xf32> to vector<1x256xf32>
    %c0_5 = arith.constant 0 : index
    %c2 = arith.constant 2 : index
    %12 = memref.load %arg3[%c0_5, %c2] : memref<3x4xf32, #tpu.memory_space<smem>>
    %13 = vector.broadcast %12 : f32 to vector<1x256xf32>
    %14 = arith.mulf %11, %13 : vector<1x256xf32>
    %15 = arith.addf %10, %14 : vector<1x256xf32>
    %16 = vector.extract_strided_slice %1 {offsets = [3, 0], sizes = [1, 256], strides = [1, 1]} : vector<4x256xf32> to vector<1x256xf32>
    %c0_6 = arith.constant 0 : index
    %c3 = arith.constant 3 : index
    %17 = memref.load %arg3[%c0_6, %c3] : memref<3x4xf32, #tpu.memory_space<smem>>
    %18 = vector.broadcast %17 : f32 to vector<1x256xf32>
    %19 = arith.mulf %16, %18 : vector<1x256xf32>
    %20 = arith.addf %15, %19 : vector<1x256xf32>
    %c0_7 = arith.constant 0 : index
    %21 = memref.load %arg4[%c0_7] : memref<3xf32, #tpu.memory_space<smem>>
    %22 = vector.broadcast %21 : f32 to vector<1x256xf32>
    %23 = arith.addf %20, %22 : vector<1x256xf32>
    %cst = arith.constant 0.000000e+00 : f32
    %24 = vector.broadcast %cst : f32 to vector<1x256xf32>
    %25 = arith.subf %24, %23 : vector<1x256xf32>
    %26 = math.exp %25 : vector<1x256xf32>
    %cst_8 = arith.constant 1.000000e+00 : f32
    %27 = vector.broadcast %cst_8 : f32 to vector<1x256xf32>
    %28 = arith.addf %27, %26 : vector<1x256xf32>
    %29 = math.rsqrt %28 : vector<1x256xf32>
    %30 = vector.extract_strided_slice %1 {offsets = [0, 0], sizes = [1, 256], strides = [1, 1]} : vector<4x256xf32> to vector<1x256xf32>
    %c1_9 = arith.constant 1 : index
    %c0_10 = arith.constant 0 : index
    %31 = memref.load %arg3[%c1_9, %c0_10] : memref<3x4xf32, #tpu.memory_space<smem>>
    %32 = vector.broadcast %31 : f32 to vector<1x256xf32>
    %33 = arith.mulf %30, %32 : vector<1x256xf32>
    %34 = vector.extract_strided_slice %1 {offsets = [1, 0], sizes = [1, 256], strides = [1, 1]} : vector<4x256xf32> to vector<1x256xf32>
    %c1_11 = arith.constant 1 : index
    %c1_12 = arith.constant 1 : index
    %35 = memref.load %arg3[%c1_11, %c1_12] : memref<3x4xf32, #tpu.memory_space<smem>>
    %36 = vector.broadcast %35 : f32 to vector<1x256xf32>
    %37 = arith.mulf %34, %36 : vector<1x256xf32>
    %38 = arith.addf %33, %37 : vector<1x256xf32>
    %39 = vector.extract_strided_slice %1 {offsets = [2, 0], sizes = [1, 256], strides = [1, 1]} : vector<4x256xf32> to vector<1x256xf32>
    %c1_13 = arith.constant 1 : index
    %c2_14 = arith.constant 2 : index
    %40 = memref.load %arg3[%c1_13, %c2_14] : memref<3x4xf32, #tpu.memory_space<smem>>
    %41 = vector.broadcast %40 : f32 to vector<1x256xf32>
    %42 = arith.mulf %39, %41 : vector<1x256xf32>
    %43 = arith.addf %38, %42 : vector<1x256xf32>
    %44 = vector.extract_strided_slice %1 {offsets = [3, 0], sizes = [1, 256], strides = [1, 1]} : vector<4x256xf32> to vector<1x256xf32>
    %c1_15 = arith.constant 1 : index
    %c3_16 = arith.constant 3 : index
    %45 = memref.load %arg3[%c1_15, %c3_16] : memref<3x4xf32, #tpu.memory_space<smem>>
    %46 = vector.broadcast %45 : f32 to vector<1x256xf32>
    %47 = arith.mulf %44, %46 : vector<1x256xf32>
    %48 = arith.addf %43, %47 : vector<1x256xf32>
    %c1_17 = arith.constant 1 : index
    %49 = memref.load %arg4[%c1_17] : memref<3xf32, #tpu.memory_space<smem>>
    %50 = vector.broadcast %49 : f32 to vector<1x256xf32>
    %51 = arith.addf %48, %50 : vector<1x256xf32>
    %cst_18 = arith.constant 0.000000e+00 : f32
    %52 = vector.broadcast %cst_18 : f32 to vector<1x256xf32>
    %53 = arith.subf %52, %51 : vector<1x256xf32>
    %54 = math.exp %53 : vector<1x256xf32>
    %cst_19 = arith.constant 1.000000e+00 : f32
    %55 = vector.broadcast %cst_19 : f32 to vector<1x256xf32>
    %56 = arith.addf %55, %54 : vector<1x256xf32>
    %57 = math.rsqrt %56 : vector<1x256xf32>
    %58 = vector.extract_strided_slice %1 {offsets = [0, 0], sizes = [1, 256], strides = [1, 1]} : vector<4x256xf32> to vector<1x256xf32>
    %c2_20 = arith.constant 2 : index
    %c0_21 = arith.constant 0 : index
    %59 = memref.load %arg3[%c2_20, %c0_21] : memref<3x4xf32, #tpu.memory_space<smem>>
    %60 = vector.broadcast %59 : f32 to vector<1x256xf32>
    %61 = arith.mulf %58, %60 : vector<1x256xf32>
    %62 = vector.extract_strided_slice %1 {offsets = [1, 0], sizes = [1, 256], strides = [1, 1]} : vector<4x256xf32> to vector<1x256xf32>
    %c2_22 = arith.constant 2 : index
    %c1_23 = arith.constant 1 : index
    %63 = memref.load %arg3[%c2_22, %c1_23] : memref<3x4xf32, #tpu.memory_space<smem>>
    %64 = vector.broadcast %63 : f32 to vector<1x256xf32>
    %65 = arith.mulf %62, %64 : vector<1x256xf32>
    %66 = arith.addf %61, %65 : vector<1x256xf32>
    %67 = vector.extract_strided_slice %1 {offsets = [2, 0], sizes = [1, 256], strides = [1, 1]} : vector<4x256xf32> to vector<1x256xf32>
    %c2_24 = arith.constant 2 : index
    %c2_25 = arith.constant 2 : index
    %68 = memref.load %arg3[%c2_24, %c2_25] : memref<3x4xf32, #tpu.memory_space<smem>>
    %69 = vector.broadcast %68 : f32 to vector<1x256xf32>
    %70 = arith.mulf %67, %69 : vector<1x256xf32>
    %71 = arith.addf %66, %70 : vector<1x256xf32>
    %72 = vector.extract_strided_slice %1 {offsets = [3, 0], sizes = [1, 256], strides = [1, 1]} : vector<4x256xf32> to vector<1x256xf32>
    %c2_26 = arith.constant 2 : index
    %c3_27 = arith.constant 3 : index
    %73 = memref.load %arg3[%c2_26, %c3_27] : memref<3x4xf32, #tpu.memory_space<smem>>
    %74 = vector.broadcast %73 : f32 to vector<1x256xf32>
    %75 = arith.mulf %72, %74 : vector<1x256xf32>
    %76 = arith.addf %71, %75 : vector<1x256xf32>
    %c2_28 = arith.constant 2 : index
    %77 = memref.load %arg4[%c2_28] : memref<3xf32, #tpu.memory_space<smem>>
    %78 = vector.broadcast %77 : f32 to vector<1x256xf32>
    %79 = arith.addf %76, %78 : vector<1x256xf32>
    %cst_29 = arith.constant 0.000000e+00 : f32
    %80 = vector.broadcast %cst_29 : f32 to vector<1x256xf32>
    %81 = arith.subf %80, %79 : vector<1x256xf32>
    %82 = math.exp %81 : vector<1x256xf32>
    %cst_30 = arith.constant 1.000000e+00 : f32
    %83 = vector.broadcast %cst_30 : f32 to vector<1x256xf32>
    %84 = arith.addf %83, %82 : vector<1x256xf32>
    %85 = math.rsqrt %84 : vector<1x256xf32>
    %86 = tpu.concatenate %29, %57, %85 in 0 : vector<1x256xf32>, vector<1x256xf32>, vector<1x256xf32> -> vector<3x256xf32>
    %c0_31 = arith.constant 0 : index
    %c0_32 = arith.constant 0 : index
    %c0_33 = arith.constant 0 : index
    %87 = vector.load %arg5[%c0_31, %c0_32, %c0_33] : memref<1x3x256xf32, #tpu.memory_space<vmem>>, vector<1x3x256xf32>
    %88 = vector.shape_cast %87 : vector<1x3x256xf32> to vector<3x256xf32>
    %89 = vector.shape_cast %86 : vector<3x256xf32> to vector<1x3x256xf32>
    tpu.vector_store %arg5[%c0_31, %c0_32, %c0_33], %89 {strides = array<i32>} : memref<1x3x256xf32, #tpu.memory_space<vmem>>, vector<1x3x256xf32>,
    return
  }
  func.func @transform_0(%arg0: i32, %arg1: i32) -> (i32, i32, i32) {
    %c0_i32 = arith.constant 0 : i32
    %c0_i32_0 = arith.constant 0 : i32
    return %arg0, %c0_i32, %arg1 : i32, i32, i32
  }
  func.func @transform_1(%arg0: i32, %arg1: i32) -> (i32, i32) {
    %c0_i32 = arith.constant 0 : i32
    %c0_i32_0 = arith.constant 0 : i32
    %c0_i32_1 = arith.constant 0 : i32
    return %c0_i32, %c0_i32_0 : i32, i32
  }
  func.func @transform_2(%arg0: i32, %arg1: i32) -> i32 {
    %c0_i32 = arith.constant 0 : i32
    %c0_i32_0 = arith.constant 0 : i32
    return %c0_i32 : i32
  }
  func.func @transform_3(%arg0: i32, %arg1: i32) -> (i32, i32, i32) {
    %c0_i32 = arith.constant 0 : i32
    %c0_i32_0 = arith.constant 0 : i32
    return %arg0, %c0_i32, %arg1 : i32, i32, i32
  }
}

</mosaic_0001>

<llo_original>
// kernel: tpu_custom_call.1
$region0: #{tpu_custom_call.1}
  #allocation0 [shape = 'u32[]', space=smem, size = 0x4, offset = 0x4, fixed_abs, tag = 'smem constant byte address 0x4 - core index']
  #allocation1 [shape = 'u32[72,128]{1,0:T(1,128)}', space=vmem, size = 0x9000, scoped, tag = 'internal scratch']
  %s0 = inlined_call_operand.hbm [shape: f32[2,4,256], index: 0, kind: input, shape index: {}]
  %s1 = inlined_call_operand.hbm [shape: f32[3,4], index: 1, kind: input, shape index: {}]
  %s2 = inlined_call_operand.vmem [shape: f32[3], index: 2, kind: input, shape index: {}]
  %s3 = inlined_call_operand.vmem [shape: f32[2,3,256], index: 3, kind: output, shape index: {}]
  %s4 = sld [smem:[#allocation0]]
  $region57: #{tpu_custom_call.1} parent=0
    _
  %s6 = ssub.s32 1, %s4
  %s7 = scalar_select 0, %s6, %s4
  $region1: #{tpu_custom_call.1} parent=0
    #allocation2 [shape = 'u8[8192]{0}', space=vmem, size = 0x2000, scoped, tag = 'input window, operand 0']
    #allocation3 [shape = 's32[2]{0}', space=sflag, size = 0x8, scoped, tag = 'scoped memory for tpu_custom_call.1']
    #allocation4 [shape = 's32[2]{0}', space=sflag, size = 0x8, scoped, tag = 'scoped memory for tpu_custom_call.1']
    #allocation5 [shape = 's32[2]{0}', space=sflag, size = 0x8, scoped, tag = 'scoped memory for tpu_custom_call.1']
    #allocation6 [shape = 'u8[2048]{0}', space=smem, size = 0x800, scoped, tag = 'input window, operand 1, single buffered']
    #allocation7 [shape = 'u8[512]{0}', space=smem, size = 0x200, scoped, tag = 'input window, operand 2, single buffered']
    %8 = vsyncpa [#allocation3], 0
    %s9 = scalar_lea.sflag [#allocation3], 1
    %10 = vsyncpa %s9, 0
    %11 = vsyncpa [#allocation4], 0
    %12 = vsyncpa [#allocation5], 0
    loop: start=0, step=1, limit=4
    $region2: #{tpu_custom_call.1} parent=1 // loop_pre_header
      _
    $region3: #{tpu_custom_call.1} parent=1 // loop_header
      %s14 = sphi 0, %s18
      %p15 = scmp.ge.s32.totalorder %s14, 4
      %s21 = sphi 0, %s33
      %s22 = sphi 0, %s29
      %s23 = sphi 0, %s21
      %s24 = sphi 0, %s22
      %s25 = sphi 0, %s23
      %s26 = sphi 0, %s24
      %s38 = sphi 0, %s40
      %s41 = sphi 0, %s38
      %s42 = sphi 0, %s41
      %s58 = sphi 0, %s42
      %s62 = sphi 0, %s62
      %s64 = sphi 0, %s62
      %s65 = sphi 0, %s64
      %s79 = sphi 0, %s65
      %s83 = sphi 0, %s83
      %s85 = sphi 0, %s83
      %s86 = sphi 0, %s85
      %s100 = sphi 0, %s86
      %s108 = sphi 0, %s110
      %s111 = sphi 0, %s108
      %s112 = sphi 0, %s111
      %s128 = sphi 0, %s112
    $region4: #{tpu_custom_call.1} parent=1 // loop_header_branch
      %17 = sbr.rel (%p15) target = $region8
    $region5: #{tpu_custom_call.1} parent=1 // loop_body
      %s19 = ssub.s32 %s14, 1
      %s20 = ssub.s32 %s14, 2
      %s27 = sadd.s32 1, %s22
      %p28 = scmp.ge.s32.totalorder %s27, 1
      %s29 = scalar_select %p28, 0, %s27
      %s30 = sadd.s32 1, %s21
      %s31 = scalar_select %p28, %s30, %s21
      %p32 = scmp.ge.s32.totalorder %s31, 2
      %s33 = scalar_select %p32, 0, %s31
      %s34 = ssub.s32 %s21, %s33
      %s35 = ssub.s32 %s22, %s29
      %s36 = sor.u32 %s34, %s35
      %p37 = scmp.eq.s32.totalorder %s36, 0
      %s39 = sadd.s32 %s38, 1
      %s40 = scalar_select %p37, %s38, %s39
      %p43 = pneg %p37
      %p44 = scmp.eq.s32.totalorder %s14, 1
      %p45 = por %p43, %p44
      %p46 = scmp.ne.s32.totalorder %s38, %s41
      %p47 = scmp.eq.s32.totalorder %s14, 0
      %p48 = por %p46, %p47
      %p49 = scmp.ne.s32.totalorder %s38, %s41
      %p50 = scmp.eq.s32.totalorder %s19, 1
      %p51 = por %p49, %p50
      %p52 = scmp.ne.s32.totalorder %s41, %s42
      %p53 = scmp.eq.s32.totalorder %s19, 0
      %p54 = por %p52, %p53
      %p55 = scmp.ne.s32.totalorder %s41, %s42
      %p56 = scmp.eq.s32.totalorder %s20, 1
      %p57 = por %p55, %p56
      %p59 = scmp.ne.s32.totalorder %s42, %s58
      %p60 = scmp.eq.s32.totalorder %s20, 0
      %p61 = por %p59, %p60
      %s63 = sadd.s32 %s62, 1
      %p66 = scmp.eq.s32.totalorder %s14, 1
      %p67 = scmp.ne.s32.totalorder %s62, %s64
      %p68 = scmp.eq.s32.totalorder %s14, 0
      %p69 = por %p67, %p68
      %p70 = scmp.ne.s32.totalorder %s62, %s64
      %p71 = scmp.eq.s32.totalorder %s19, 1
      %p72 = por %p70, %p71
      %p73 = scmp.ne.s32.totalorder %s64, %s65
      %p74 = scmp.eq.s32.totalorder %s19, 0
      %p75 = por %p73, %p74
      %p76 = scmp.ne.s32.totalorder %s64, %s65
      %p77 = scmp.eq.s32.totalorder %s20, 1
      %p78 = por %p76, %p77
      %p80 = scmp.ne.s32.totalorder %s65, %s79
      %p81 = scmp.eq.s32.totalorder %s20, 0
      %p82 = por %p80, %p81
      %s84 = sadd.s32 %s83, 1
      %p87 = scmp.eq.s32.totalorder %s14, 1
      %p88 = scmp.ne.s32.totalorder %s83, %s85
      %p89 = scmp.eq.s32.totalorder %s14, 0
      %p90 = por %p88, %p89
      %p91 = scmp.ne.s32.totalorder %s83, %s85
      %p92 = scmp.eq.s32.totalorder %s19, 1
      %p93 = por %p91, %p92
      %p94 = scmp.ne.s32.totalorder %s85, %s86
      %p95 = scmp.eq.s32.totalorder %s19, 0
      %p96 = por %p94, %p95
      %p97 = scmp.ne.s32.totalorder %s85, %s86
      %p98 = scmp.eq.s32.totalorder %s20, 1
      %p99 = por %p97, %p98
      %p101 = scmp.ne.s32.totalorder %s86, %s100
      %p102 = scmp.eq.s32.totalorder %s20, 0
      %p103 = por %p101, %p102
      %s104 = ssub.s32 %s21, %s33
      %s105 = ssub.s32 %s22, %s29
      %s106 = sor.u32 %s104, %s105
      %p107 = scmp.eq.s32.totalorder %s106, 0
      %s109 = sadd.s32 %s108, 1
      %s110 = scalar_select %p107, %s108, %s109
      %p113 = pneg %p107
      %p114 = scmp.eq.s32.totalorder %s14, 1
      %p115 = por %p113, %p114
      %p116 = scmp.ne.s32.totalorder %s108, %s111
      %p117 = scmp.eq.s32.totalorder %s14, 0
      %p118 = por %p116, %p117
      %p119 = scmp.ne.s32.totalorder %s108, %s111
      %p120 = scmp.eq.s32.totalorder %s19, 1
      %p121 = por %p119, %p120
      %p122 = scmp.ne.s32.totalorder %s111, %s112
      %p123 = scmp.eq.s32.totalorder %s19, 0
      %p124 = por %p122, %p123
      %p125 = scmp.ne.s32.totalorder %s111, %s112
      %p126 = scmp.eq.s32.totalorder %s20, 1
      %p127 = por %p125, %p126
      %p129 = scmp.ne.s32.totalorder %s112, %s128
      %p130 = scmp.eq.s32.totalorder %s20, 0
      %p131 = por %p129, %p130
      %p132 = scmp.le.s32.totalorder 1, %s14
      %p133 = scmp.lt.s32.totalorder %s14, 3
      %p134 = pnand %p132, %p133
      %p135 = pneg %p134
      // Predicated region
      $region9: #{tpu_custom_call.1} parent=5 // pred_check
        _
      $region10: #{tpu_custom_call.1} parent=5 // pred_check_branch
        %137 = sbr.rel (%p134) target = $region12
      $region11: #{tpu_custom_call.1} parent=5 // pred_region
        %s138 = ssub.s32 %s14, 1
        // Predicated region
        $region13: #{tpu_custom_call.1} parent=11 // pred_check
          %p139 = pneg %p75
        $region14: #{tpu_custom_call.1} parent=11 // pred_check_branch
          %141 = sbr.rel (%p139) target = $region16
        $region15: #{tpu_custom_call.1} parent=11 // pred_region
          %143 = vsyncadd [#allocation4], 0
          %s145 = sshll.u32 %s1, 4
          %s146 = int_to_ptr.hbm [resolvable:$true] %s145
          %148 = dma.hbm_to_smem %s146, 64, [#allocation6], [#allocation4]
        $region16: #{tpu_custom_call.1} parent=11 // pred_fallthru
          _
        // Predicated region
        $region17: #{tpu_custom_call.1} parent=11 // pred_check
          %p149 = pneg %p96
        $region18: #{tpu_custom_call.1} parent=11 // pred_check_branch
          %151 = sbr.rel (%p149) target = $region20
        $region19: #{tpu_custom_call.1} parent=11 // pred_region
          %153 = vsyncadd [#allocation5], 0
          %s155 = sshll.u32 %s2, 4
          %s156 = int_to_ptr.vmem [resolvable:$true] %s155
          %158 = dma.vmem_to_smem %s156, 16, [#allocation7], [#allocation5]
        $region20: #{tpu_custom_call.1} parent=11 // pred_fallthru
          _
      $region12: #{tpu_custom_call.1} parent=5 // pred_fallthru
        _
      %p159 = scmp.lt.s32.totalorder %s14, 2
      // Predicated region
      $region21: #{tpu_custom_call.1} parent=5 // pred_check
        %p160 = pneg %p159
      $region22: #{tpu_custom_call.1} parent=5 // pred_check_branch
        %162 = sbr.rel (%p160) target = $region24
      $region23: #{tpu_custom_call.1} parent=5 // pred_region
        // Predicated region
        $region25: #{tpu_custom_call.1} parent=23 // pred_check
          %p163 = pneg %p48
        $region26: #{tpu_custom_call.1} parent=23 // pred_check_branch
          %165 = sbr.rel (%p163) target = $region28
        $region27: #{tpu_custom_call.1} parent=23 // pred_region
          %s166 = sand.u32 %s38, 1
          %s167 = scalar_lea.sflag [#allocation3], %s166
          %s168 = sand.u32 %s38, 1
          %s169 = smul.addr %s168, 8
          %s170 = scalar_lea.vmem [#allocation2], %s169
          %s171 = smul.u32 2, %s22
          %173 = vsyncadd %s167, 0
          %s174 = smul.addr %s21, 2
          %s175 = sadd.s32 %s171, %s174
          %s176 = smul.addr %s175, 4
          %s177 = scalar_lea.hbm %s0, %s176
          %s179 = sshll.u32 %s177, 4
          %s180 = int_to_ptr.hbm [resolvable:$true] %s179
          %s181 = sshll.u32 %s170, 4
          %s182 = int_to_ptr.vmem [resolvable:$true] %s181
          %184 = dma.hbm_to_vmem [thread:$0]  %s180, 128, %s182, %s167
        $region28: #{tpu_custom_call.1} parent=23 // pred_fallthru
          _
      $region24: #{tpu_custom_call.1} parent=5 // pred_fallthru
        _
      %p185 = scmp.le.s32.totalorder 1, %s14
      %p186 = scmp.lt.s32.totalorder %s14, 3
      %p187 = pnand %p185, %p186
      %p188 = pneg %p187
      // Predicated region
      $region29: #{tpu_custom_call.1} parent=5 // pred_check
        _
      $region30: #{tpu_custom_call.1} parent=5 // pred_check_branch
        %190 = sbr.rel (%p187) target = $region32
      $region31: #{tpu_custom_call.1} parent=5 // pred_region
        %s191 = ssub.s32 %s14, 1
        %s192 = sand.u32 %s41, 1
        %s193 = scalar_lea.sflag [#allocation3], %s192
        %s194 = sand.u32 %s41, 1
        %s195 = smul.addr %s194, 8
        %s196 = scalar_lea.vmem [#allocation2], %s195
        // Predicated region
        $region33: #{tpu_custom_call.1} parent=31 // pred_check
          %p197 = pneg %p54
        $region34: #{tpu_custom_call.1} parent=31 // pred_check_branch
          %199 = sbr.rel (%p197) target = $region36
        $region35: #{tpu_custom_call.1} parent=31 // pred_region
          %201 = dma.done %s193, 128
        $region36: #{tpu_custom_call.1} parent=31 // pred_fallthru
          _
        // Predicated region
        $region37: #{tpu_custom_call.1} parent=31 // pred_check
          %p202 = pneg %p75
        $region38: #{tpu_custom_call.1} parent=31 // pred_check_branch
          %204 = sbr.rel (%p202) target = $region40
        $region39: #{tpu_custom_call.1} parent=31 // pred_region
          %206 = dma.done [#allocation4], 64
        $region40: #{tpu_custom_call.1} parent=31 // pred_fallthru
          _
        // Predicated region
        $region41: #{tpu_custom_call.1} parent=31 // pred_check
          %p207 = pneg %p96
        $region42: #{tpu_custom_call.1} parent=31 // pred_check_branch
          %209 = sbr.rel (%p207) target = $region44
        $region43: #{tpu_custom_call.1} parent=31 // pred_region
          %211 = dma.done [#allocation5], 16
        $region44: #{tpu_custom_call.1} parent=31 // pred_fallthru
          _
        %212 = sfence
        %s213 = sand.u32 %s41, 1
        %s214 = scalar_lea.sflag [#allocation3], %s213
        %s215 = sand.u32 %s41, 1
        %s216 = smul.addr %s215, 8
        %s217 = scalar_lea.vmem [#allocation2], %s216
        %p218 = pneg %p54
        %p219 = pneg %p51
        %p220 = pneg %p75
        %p221 = pneg %p72
        %p222 = pneg %p96
        %p223 = pneg %p93
        %p224 = pneg %p124
        %p225 = pneg %p121
        %s226 = smul.u32 2, %s24
        %p227 = scmp.lt.s32.totalorder %s23, 1
        %s228 = scalar_select %p227, %s23, 1
        %p229 = scmp.lt.s32.totalorder %s226, 1
        %s230 = scalar_select %p229, %s226, 1
        %s231 = smul.addr %s228, 2
        %s232 = sadd.s32 %s230, %s231
        %s233 = smul.addr %s232, 4
        %s234 = scalar_lea.vmem %s3, %s233
        %s235 = smul.u32 2, %s24
        %s236 = smul.u32 2, %s24
        %p237 = scmp.lt.s32.totalorder %s23, 1
        %s238 = scalar_select %p237, %s23, 1
        %p239 = scmp.lt.s32.totalorder %s236, 1
        %s240 = scalar_select %p239, %s236, 1
        %s241 = smul.addr %s238, 2
        %s242 = sadd.s32 %s240, %s241
        %s243 = smul.addr %s242, 4
        %s244 = scalar_lea.vmem %s3, %s243
        %s245 = smul.u32 2, %s24
        %v246 = vld [vmem:[%s196] sm:$0xff]
        %s247 = sld [smem:[#allocation6]]
        %v248 = vstv %s247
        %v249 = vmul.f32 %v246, %v248
        %s250 = sld [smem:[#allocation6 + $0x1]]
        %v251 = vstv %s250
        %v252 = vmul.f32 %v246, %v251
        %v254 = vrot.slane %v252, 5
        %v255 = vrot.slane %v254, 4
        %v257 = vadd.f32 %v249, %v255
        %s258 = sld [smem:[#allocation6 + $0x2]]
        %v259 = vstv %s258
        %v260 = vmul.f32 %v246, %v259
        %v262 = vrot.slane %v260, 6
        %v263 = vrot.slane %v262, 4
        %v265 = vadd.f32 %v257, %v263
        %s266 = sld [smem:[#allocation6 + $0x3]]
        %v267 = vstv %s266
        %v268 = vmul.f32 %v246, %v267
        %v270 = vrot.slane %v268, 7
        %v271 = vrot.slane %v270, 4
        %v273 = vadd.f32 %v265, %v271
        %s274 = sld [smem:[#allocation7]]
        %v275 = vstv %s274
        %v276 = vadd.f32 %v273, %v275
        %v277 = vsub.f32 0.0, %v276
        %v278 = vmul.f32 %v277, 1.442695
        %v279 = vpow.pop %v278
        %v280 = vadd.f32 %v279, 1.0
        %v281 = vrsqrt.pop %v280
        %v282 = vmul.f32 %v281, %v280
        %v283 = vmul.f32 %v282, %v281
        %v284 = vmul.f32 0.5, %v283
        %v285 = vsub.f32 1.5, %v284
        %v286 = vmul.f32 %v281, %v285
        %vm287 = vweird.f32 %v280
        %vm288 = vweird.f32 %v281
        %vm289 = vmor %vm287, %vm288
        %v290 = vsel %vm289, %v281, %v286
        %s291 = sld [smem:[#allocation6 + $0x80]]
        %v292 = vstv %s291
        %v293 = vmul.f32 %v246, %v292
        %s294 = sld [smem:[#allocation6 + $0x81]]
        %v295 = vstv %s294
        %v296 = vmul.f32 %v246, %v295
        %v298 = vrot.slane %v296, 5
        %v299 = vrot.slane %v298, 4
        %v301 = vadd.f32 %v293, %v299
        %s302 = sld [smem:[#allocation6 + $0x82]]
        %v303 = vstv %s302
        %v304 = vmul.f32 %v246, %v303
        %v306 = vrot.slane %v304, 6
        %v307 = vrot.slane %v306, 4
        %v309 = vadd.f32 %v301, %v307
        %s310 = sld [smem:[#allocation6 + $0x83]]
        %v311 = vstv %s310
        %v312 = vmul.f32 %v246, %v311
        %v314 = vrot.slane %v312, 7
        %v315 = vrot.slane %v314, 4
        %v317 = vadd.f32 %v309, %v315
        %s318 = sld [smem:[#allocation7 + $0x1]]
        %v319 = vstv %s318
        %v320 = vadd.f32 %v317, %v319
        %v321 = vsub.f32 0.0, %v320
        %v322 = vmul.f32 %v321, 1.442695
        %v323 = vpow.pop %v322
        %v324 = vadd.f32 %v323, 1.0
        %v325 = vrsqrt.pop %v324
        %v326 = vmul.f32 %v325, %v324
        %v327 = vmul.f32 %v326, %v325
        %v328 = vmul.f32 0.5, %v327
        %v329 = vsub.f32 1.5, %v328
        %v330 = vmul.f32 %v325, %v329
        %vm331 = vweird.f32 %v324
        %vm332 = vweird.f32 %v325
        %vm333 = vmor %vm331, %vm332
        %v334 = vsel %vm333, %v325, %v330
        %s335 = sld [smem:[#allocation6 + $0x100]]
        %v336 = vstv %s335
        %v337 = vmul.f32 %v246, %v336
        %s338 = sld [smem:[#allocation6 + $0x101]]
        %v339 = vstv %s338
        %v340 = vmul.f32 %v246, %v339
        %v342 = vrot.slane %v340, 5
        %v343 = vrot.slane %v342, 4
        %v345 = vadd.f32 %v337, %v343
        %s346 = sld [smem:[#allocation6 + $0x102]]
        %v347 = vstv %s346
        %v348 = vmul.f32 %v246, %v347
        %v350 = vrot.slane %v348, 6
        %v351 = vrot.slane %v350, 4
        %v353 = vadd.f32 %v345, %v351
        %s354 = sld [smem:[#allocation6 + $0x103]]
        %v355 = vstv %s354
        %v356 = vmul.f32 %v246, %v355
        %v358 = vrot.slane %v356, 7
        %v359 = vrot.slane %v358, 4
        %v361 = vadd.f32 %v353, %v359
        %s362 = sld [smem:[#allocation7 + $0x2]]
        %v363 = vstv %s362
        %v364 = vadd.f32 %v361, %v363
        %v365 = vsub.f32 0.0, %v364
        %v366 = vmul.f32 %v365, 1.442695
        %v367 = vpow.pop %v366
        %v368 = vadd.f32 %v367, 1.0
        %v369 = vrsqrt.pop %v368
        %v370 = vmul.f32 %v369, %v368
        %v371 = vmul.f32 %v370, %v369
        %v372 = vmul.f32 0.5, %v371
        %v373 = vsub.f32 1.5, %v372
        %v374 = vmul.f32 %v369, %v373
        %vm375 = vweird.f32 %v368
        %vm376 = vweird.f32 %v369
        %vm377 = vmor %vm375, %vm376
        %v378 = vsel %vm377, %v369, %v374
        %v380 = vperm.slane %v290, 0
        %v381 = vperm.slane %v290, 4
        %v385 = vperm.slane %v334, 0
        %v386 = vperm.slane %v334, 4
        %v390 = vperm.slane %v378, 0
        %v391 = vperm.slane %v378, 4
        %vm394 = vcmask 1040384
        %v395 = vsel %vm394, %v380, %v385
        %v396 = vsel %vm394, %v381, %v386
        %vm397 = vcmask 1041408
        %v398 = vsel %vm397, %v395, %v390
        %v399 = vsel %vm397, %v396, %v391
        %v402 = vrot.slane %v399, 4
        %vm403 = vcmask 1043456
        %v404 = vsel %vm403, %v398, %v402
        %406 = vst [vmem:[%s244] sm:$0x77] %v404
        %s407 = smul.u32 2, %s24
        %p408 = scmp.lt.s32.totalorder %s23, 1
        %s409 = scalar_select %p408, %s23, 1
        %p410 = scmp.lt.s32.totalorder %s407, 1
        %s411 = scalar_select %p410, %s407, 1
        %s412 = smul.addr %s409, 2
        %s413 = sadd.s32 %s411, %s412
        %s414 = smul.addr %s413, 4
        %s415 = scalar_lea.vmem %s3, %s414
        // Predicated region
        $region45: #{tpu_custom_call.1} parent=31 // pred_check
          %p416 = pneg %p121
        $region46: #{tpu_custom_call.1} parent=31 // pred_check_branch
          %418 = sbr.rel (%p416) target = $region48
        $region47: #{tpu_custom_call.1} parent=31 // pred_region
          %s419 = smul.u32 2, %s24
        $region48: #{tpu_custom_call.1} parent=31 // pred_fallthru
          _
      $region32: #{tpu_custom_call.1} parent=5 // pred_fallthru
        _
      %p420 = scmp.le.s32.totalorder 2, %s14
      // Predicated region
      $region49: #{tpu_custom_call.1} parent=5 // pred_check
        %p421 = pneg %p420
      $region50: #{tpu_custom_call.1} parent=5 // pred_check_branch
        %423 = sbr.rel (%p421) target = $region52
      $region51: #{tpu_custom_call.1} parent=5 // pred_region
        %s424 = ssub.s32 %s14, 2
        // Predicated region
        $region53: #{tpu_custom_call.1} parent=51 // pred_check
          %p425 = pneg %p127
        $region54: #{tpu_custom_call.1} parent=51 // pred_check_branch
          %427 = sbr.rel (%p425) target = $region56
        $region55: #{tpu_custom_call.1} parent=51 // pred_region
          %s428 = smul.u32 2, %s26
          %p429 = scmp.lt.s32.totalorder %s25, 1
          %s430 = scalar_select %p429, %s25, 1
          %p431 = scmp.lt.s32.totalorder %s428, 1
          %s432 = scalar_select %p431, %s428, 1
          %s433 = smul.addr %s430, 2
          %s434 = sadd.s32 %s432, %s433
          %s435 = smul.addr %s434, 4
          %s436 = scalar_lea.vmem %s3, %s435
        $region56: #{tpu_custom_call.1} parent=51 // pred_fallthru
          _
      $region52: #{tpu_custom_call.1} parent=5 // pred_fallthru
        _
    $region6: #{tpu_custom_call.1} parent=1 // loop_footer
      %s18 = sadd.s32 1, %s14
    $region7: #{tpu_custom_call.1} parent=1 // loop_footer_branch
      %13 = sbr.rel target = $region3
    $region8: #{tpu_custom_call.1} parent=1 // loop_exit
      _
    %437 = vsyncpa [#allocation3], 1
    %s438 = scalar_lea.sflag [#allocation3], 1
    %439 = vsyncpa %s438, 1
    %440 = vsyncpa [#allocation4], 1
    %s441 = scalar_lea.sflag [#allocation4], 1
    %442 = vsyncpa %s441, 1
    %443 = vsyncpa [#allocation5], 1
    %s444 = scalar_lea.sflag [#allocation5], 1
    %445 = vsyncpa %s444, 1

</llo_original>
